<compile_context>
chip_gen: v7x
topology: tpu7x:2x2x1
jax: 0.10.0
libtpu: 0.0.40
codegen_flags: <defaults>
</compile_context>

<pallas_src>
from functools import partial

import numpy as np
import jax
import jax.numpy as jnp
from jax.experimental import pallas as pl
from jax.experimental.pallas import tpu as pltpu


# ----------------------------------------------------------------------------
# Constants (fixed, lane-dense padded dimensions)
# ----------------------------------------------------------------------------
VP = 128              # padded vocab lanes (num_vocab + 1 <= 128)
HP = 128              # padded head_dim lanes (head_dim <= 128)
CONV_S = 4            # ConvolutionHead conv_size for resolution == 16
N_SLAB = 3 + CONV_S   # 3 linear heads + 4 deconv kernel positions = 7 packed 128-lane slabs


def _round_up(x, m):
    return ((x + m - 1) // m) * m


def _pick_tm(m_rows):
    """Row tile: big enough to amortize per-step overhead, >=2 tiles for v7x's 2 TCs,
    multiple of 16 so bf16 (16,128) output tiles stay unmasked."""
    half = (m_rows + 1) // 2
    return min(512, _round_up(max(half, 16), 16))


# ----------------------------------------------------------------------------
# Pallas kernel (single fused body for all heads)
#   kind_ref  [n_tiles]        int32 SMEM (scalar prefetch): bit0=has linear rows,
#                              bit1=has conv rows, 0=all-pad tile
#   x_ref     [TM, E]          f32  gathered latent rows (cast to bf16 in-kernel)
#   code_ref  [TM, 1]          int32 -1=pad, 0/1/2=linear head idx, 3+j=conv kernel pos j
#   wpack     [E, 7*128]       bf16 slabs 0..2 = linear heads, 3..6 = deconv kernel pos
#   bpack     [1, 7*128]       f32  matching biases (deconv bias replicated per slab)
#   wout      [128, 128]       bf16 conv output projection
#   bout      [1, 128]         f32
#   o_ref     [TM, 128]        bf16
# ----------------------------------------------------------------------------
def _composite_head_kernel(kind_ref, x_ref, code_ref, wpack_ref, bpack_ref,
                           wout_ref, bout_ref, o_ref):
    kind = kind_ref[pl.program_id(0)]
    has_lin = jnp.logical_or(kind == 1, kind == 3)
    has_conv = kind >= 2

    @pl.when(kind == 0)                    # all-pad tile: nothing to compute
    def _():
        o_ref[...] = jnp.zeros(o_ref.shape, o_ref.dtype)

    @pl.when(kind != 0)
    def _():
        x = x_ref[...].astype(jnp.bfloat16)            # [TM, E]
        code = code_ref[...]                           # [TM, 1]

        # One MXU stream: 3 linear heads + 4 deconv kernel-position slabs at once.
        acc = jnp.dot(x, wpack_ref[...], preferred_element_type=jnp.float32)  # [TM, 7*128]

        # ---- linear path (only if this tile has linear rows) ----
        @pl.when(has_lin)
        def _():
            is0 = code == 0
            is1 = code == 1
            islin = jnp.logical_and(code >= 0, code < 3)
            lin = jnp.where(is0, acc[:, 0 * VP:1 * VP],
                  jnp.where(is1, acc[:, 1 * VP:2 * VP], acc[:, 2 * VP:3 * VP]))
            bias = jnp.where(is0, bpack_ref[:, 0 * VP:1 * VP],
                   jnp.where(is1, bpack_ref[:, 1 * VP:2 * VP], bpack_ref[:, 2 * VP:3 * VP]))
            # bias added once, after slab selection; pad/conv rows forced to zero
            o_ref[...] = jnp.where(islin, lin + bias, 0.0).astype(o_ref.dtype)

        @pl.when(jnp.logical_not(has_lin))
        def _():
            o_ref[...] = jnp.zeros(o_ref.shape, o_ref.dtype)

        # ---- conv path (only if this tile has conv rows) ----
        @pl.when(has_conv)
        def _():
            h = jnp.where(code == 3, acc[:, 3 * VP:4 * VP],
                jnp.where(code == 4, acc[:, 4 * VP:5 * VP],
                jnp.where(code == 5, acc[:, 5 * VP:6 * VP], acc[:, 6 * VP:7 * VP])))
            h = h + bpack_ref[:, 3 * VP:4 * VP]        # deconv bias, same for all slots
            conv = jnp.dot(h.astype(jnp.bfloat16), wout_ref[...],
                           preferred_element_type=jnp.float32) + bout_ref[...]
            o_ref[...] = jnp.where(code >= 3, conv.astype(o_ref.dtype), o_ref[...])


# ----------------------------------------------------------------------------
# Jitted device path: gather -> single pallas_call -> slice/convert
# ----------------------------------------------------------------------------
@partial(jax.jit, static_argnames=("Mp", "TM", "N", "S_max", "V"))
def _device_forward(x, src, code, kind, wpack, bpack, wout, bout,
                    *, Mp, TM, N, S_max, V):
    E = x.shape[-1]
    xg = jnp.take(x.reshape(-1, E), src, axis=0)       # [Mp, E] f32 (bf16 cast in-kernel)
    out = pl.pallas_call(
        _composite_head_kernel,
        out_shape=jax.ShapeDtypeStruct((Mp, VP), jnp.bfloat16),
        grid_spec=pltpu.PrefetchScalarGridSpec(
            num_scalar_prefetch=1,
            grid=(Mp // TM,),
            in_specs=[
                pl.BlockSpec((TM, E), lambda i, k: (i, 0)),
                pl.BlockSpec((TM, 1), lambda i, k: (i, 0)),
                pl.BlockSpec((E, N_SLAB * VP), lambda i, k: (0, 0)),
                pl.BlockSpec((1, N_SLAB * VP), lambda i, k: (0, 0)),
                pl.BlockSpec((HP, VP), lambda i, k: (0, 0)),
                pl.BlockSpec((1, VP), lambda i, k: (0, 0)),
            ],
            out_specs=pl.BlockSpec((TM, VP), lambda i, k: (i, 0)),
        ),
        compiler_params=pltpu.CompilerParams(
            dimension_semantics=("parallel",),
            vmem_limit_bytes=32 * 1024 * 1024),
    )(kind, xg, code, wpack, bpack, wout, bout)
    # single fused slice + dtype restore back to the logical [N, S, V] layout
    return out[:N * S_max, :V].astype(jnp.float32).reshape(N, S_max, V)


# ----------------------------------------------------------------------------
# Parameter construction: raw f32 (PyTorch layouts) + packed device weights built ONCE
# ----------------------------------------------------------------------------
def init_params(key, num_vocab, embed_dim, head_dim, conv_size=CONV_S):
    assert conv_size == CONV_S
    V = num_vocab + 1
    E, H = embed_dim, head_dim
    assert V <= VP and H <= HP
    keys = jax.random.split(key, 10)
    scale = 0.02

    w_lin = [scale * jax.random.normal(keys[i], (E, V), jnp.float32) for i in range(3)]
    b_lin = [scale * jax.random.normal(keys[3 + i], (V,), jnp.float32) for i in range(3)]
    # ConvTranspose1d(E, H, kernel=s, stride=s) weight layout is [E, H, s] (in, out, k)
    w_dec_pt = scale * jax.random.normal(keys[6], (E, H, conv_size), jnp.float32)
    b_dec = scale * jax.random.normal(keys[7], (H,), jnp.float32)
    w_out = scale * jax.random.normal(keys[8], (H, V), jnp.float32)
    b_out = scale * jax.random.normal(keys[9], (V,), jnp.float32)

    # --- packed / padded device weights (hoisted out of the hot path) ---
    wpack = np.zeros((E, N_SLAB * VP), np.float32)
    bpack = np.zeros((1, N_SLAB * VP), np.float32)
    for i in range(3):
        wpack[:, i * VP:i * VP + V] = np.asarray(w_lin[i])
        bpack[0, i * VP:i * VP + V] = np.asarray(b_lin[i])
    # correct ConvTranspose1d flattening: [E, H, s] -> kernel-position-major [E, s, H]
    w_dec_sh = np.transpose(np.asarray(w_dec_pt), (0, 2, 1))      # [E, s, H]
    for j in range(conv_size):
        wpack[:, (3 + j) * VP:(3 + j) * VP + H] = w_dec_sh[:, j, :]
        bpack[0, (3 + j) * VP:(3 + j) * VP + H] = np.asarray(b_dec)  # same bias each slot

    wout_p = np.zeros((HP, VP), np.float32)
    wout_p[:H, :V] = np.asarray(w_out)
    bout_p = np.zeros((1, VP), np.float32)
    bout_p[0, :V] = np.asarray(b_out)

    return {
        "wpack": jnp.asarray(wpack).astype(jnp.bfloat16),
        "bpack": jnp.asarray(bpack),
        "wout": jnp.asarray(wout_p).astype(jnp.bfloat16),
        "bout": jnp.asarray(bout_p),
        "raw": {"w_lin": w_lin, "b_lin": b_lin, "w_dec_pt": w_dec_pt,
                "b_dec": b_dec, "w_out": w_out, "b_out": b_out,
                "conv_size": conv_size, "head_dim": H},
    }


# ----------------------------------------------------------------------------
# Host-side row schedule (shape-defining; mirrors the PyTorch loop exactly) + cache
# ----------------------------------------------------------------------------
_REDUCTION = {1: 1, 2: 1, 3: 1, 4: 4, 5: 8, 6: 8, 7: 8, 8: 8}
_SCHEDULE_CACHE = {}


def _num_heads(resolution):
    return sum(resolution >= r for r in (2, 4, 8, 16))


def _build_schedule(depth_np, T, resolution, last_only):
    key = (depth_np.tobytes(), depth_np.shape, int(T), int(resolution), bool(last_only))
    cached = _SCHEDULE_CACHE.get(key)
    if cached is not None:
        return cached

    N = depth_np.shape[0]
    batch_depth = int(depth_np.max())
    n_heads = _num_heads(resolution)
    src_rows, codes = [], []
    for n in range(N):
        dep = depth_np[n]
        src, cod = [], []
        vector_idx = 0
        for layer_idx in range(n_heads):
            layer_depth = layer_idx + 1
            # NOTE: mirrors the PyTorch reference exactly -- under last_only the
            # `continue` fires BEFORE num_vectors is computed, so vector_idx is
            # intentionally NOT advanced for skipped layers (same as the reference).
            if last_only and layer_depth != batch_depth:
                continue
            if layer_depth > batch_depth:
                break
            count = int((dep == layer_depth).sum())
            nv = count // _REDUCTION[layer_depth]
            if layer_depth <= 3:                      # LinearHead
                for t in range(nv):
                    src.append(n * T + vector_idx + t)
                    cod.append(layer_idx)
            else:                                     # ConvolutionHead(conv_size=4)
                for t in range(nv):
                    for j in range(CONV_S):           # token t -> output rows t*4 + j
                        src.append(n * T + vector_idx + t)
                        cod.append(3 + j)
            vector_idx += nv
        src_rows.append(src)
        codes.append(cod)

    S_max = max(len(s) for s in src_rows)
    if S_max == 0:
        entry = {"S_max": 0}
        _SCHEDULE_CACHE[key] = entry
        return entry

    M = N * S_max
    TM = _pick_tm(M)
    Mp = _round_up(M, TM)
    src_flat = np.zeros((Mp,), np.int32)
    code_flat = np.full((Mp,), -1, np.int32)          # -1 => padding row (zeros)
    for n in range(N):
        s, c = src_rows[n], codes[n]
        src_flat[n * S_max:n * S_max + len(s)] = s
        code_flat[n * S_max:n * S_max + len(c)] = c

    # per-tile head-type flags (bit0 = linear rows present, bit1 = conv rows present)
    n_tiles = Mp // TM
    kind = np.zeros((n_tiles,), np.int32)
    for t in range(n_tiles):
        c = code_flat[t * TM:(t + 1) * TM]
        k = 0
        if np.any((c >= 0) & (c < 3)):
            k |= 1
        if np.any(c >= 3):
            k |= 2
        kind[t] = k

    entry = {"S_max": S_max, "Mp": Mp, "TM": TM,
             "src": jnp.asarray(src_flat),
             "code": jnp.asarray(code_flat).reshape(Mp, 1),
             "kind": jnp.asarray(kind)}
    _SCHEDULE_CACHE[key] = entry
    return entry


# ----------------------------------------------------------------------------
# CompositeHeadA forward (single pallas_call)
# ----------------------------------------------------------------------------
def composite_head_a_forward(params, x, value, depth, position,
                             resolution, num_vocab, last_only=False):
    """x: [N, T, E], value/depth: [N, T], position: [N, T, A] -> [N, S, num_vocab+1]."""
    del value, position  # spatial_encoding=None configuration: unused by these heads
    if resolution >= 32:
        # TODO(synk): SubstitutionHead / DoubleSubstitutionHead not implemented.
        raise NotImplementedError("resolution >= 32 heads not implemented")
    N, T, E = x.shape
    V = num_vocab + 1

    # TODO(synk): pass depth as a host/numpy array to skip this device->host sync entirely.
    depth_np = np.asarray(depth)
    sched = _build_schedule(depth_np, T, resolution, last_only)
    if sched["S_max"] == 0:
        return jnp.zeros((N, 0, V), jnp.float32)

    return _device_forward(x, sched["src"], sched["code"], sched["kind"],
                           params["wpack"], params["bpack"],
                           params["wout"], params["bout"],
                           Mp=sched["Mp"], TM=sched["TM"],
                           N=N, S_max=sched["S_max"], V=V)


# ----------------------------------------------------------------------------
# Pure-jnp f32 reference (mirrors the PyTorch CompositeHeadA loop) for checking
# ----------------------------------------------------------------------------
def reference_forward(raw, x, depth_np, resolution, num_vocab, last_only=False):
    n_heads = _num_heads(resolution)
    N, T, E = x.shape
    V = num_vocab + 1
    s, H = raw["conv_size"], raw["head_dim"]
    batch_depth = int(depth_np.max())
    outs = []
    for n in range(N):
        dep = depth_np[n]
        rows = []
        vector_idx = 0
        for layer_idx in range(n_heads):
            layer_depth = layer_idx + 1
            if last_only and layer_depth != batch_depth:
                continue
            if layer_depth > batch_depth:
                break
            count = int((dep == layer_depth).sum())
            nv = count // _REDUCTION[layer_depth]
            vec = x[n, vector_idx:vector_idx + nv]
            if nv > 0:
                if layer_depth <= 3:
                    rows.append(vec @ raw["w_lin"][layer_idx] + raw["b_lin"][layer_idx])
                else:
                    # ConvTranspose1d(E,H,k=s,stride=s): out[t*s+j, h] = sum_e v[t,e] W[e,h,j] + b[h]
                    hid = jnp.einsum("te,ehj->tjh", vec, raw["w_dec_pt"]) + raw["b_dec"]
                    rows.append(hid.reshape(nv * s, H) @ raw["w_out"] + raw["b_out"])
            vector_idx += nv
        sample = jnp.concatenate(rows, axis=0) if rows else jnp.zeros((0, V), jnp.float32)
        outs.append(sample)
    S_max = max(int(o.shape[0]) for o in outs)
    return jnp.stack([jnp.pad(o, ((0, S_max - o.shape[0]), (0, 0))) for o in outs], axis=0)


# ----------------------------------------------------------------------------
if __name__ == "__main__":
    key = jax.random.PRNGKey(0)
    num_vocab, embed_dim, head_dim, n_layer, resolution = 16, 32, 16, 1, 16
    N, T, A = 2, 16, 3

    # Depth token sequences (token value 0 == padding, never selected).
    dep0 = [1] * 2 + [2] * 2 + [3] * 4 + [4] * 8                  # 16 tokens
    dep1 = [1] * 2 + [2] * 2 + [3] * 4 + [4] * 4 + [0] * 4        # 16 tokens (ragged)
    depth = jnp.array([dep0, dep1], dtype=jnp.int32)

    kx, kv, kp, kw = jax.random.split(key, 4)
    x = jax.random.normal(kx, (N, T, embed_dim), jnp.float32)
    value = jax.random.randint(kv, (N, T), 1, num_vocab + 1)
    position = jax.random.randint(kp, (N, T, A), 0, resolution)

    params = init_params(kw, num_vocab, embed_dim, head_dim, conv_size=4)

    # ---- full forward ----
    out = composite_head_a_forward(params, x, value, depth, position,
                                   resolution, num_vocab, last_only=False)
    out = jax.block_until_ready(out)
    # sample 0: 2 + 2 + 4 + (8//4)*4 = 16 rows ; sample 1: 2 + 2 + 4 + (4//4)*4 = 12 rows
    assert out.shape == (N, 16, num_vocab + 1), out.shape
    assert bool(jnp.all(out[1, 12:] == 0.0))   # pad_sequence padding

    ref = reference_forward(params["raw"], x, np.asarray(depth),
                            resolution, num_vocab, last_only=False)
    np.testing.assert_allclose(np.asarray(out), np.asarray(ref), atol=2e-2, rtol=2e-1)

    # ---- repeat call: exercises the schedule + jit caches, must be bit-identical ----
    out2 = jax.block_until_ready(
        composite_head_a_forward(params, x, value, depth, position,
                                 resolution, num_vocab, last_only=False))
    np.testing.assert_array_equal(np.asarray(out), np.asarray(out2))

    # ---- last_only forward (conv-only tiles: exercises the pl.when gating) ----
    out_last = composite_head_a_forward(params, x, value, depth, position,
                                        resolution, num_vocab, last_only=True)
    out_last = jax.block_until_ready(out_last)
    assert out_last.shape == (N, 8, num_vocab + 1), out_last.shape
    assert bool(jnp.all(out_last[1, 4:] == 0.0))
    ref_last = reference_forward(params["raw"], x, np.asarray(depth),
                                 resolution, num_vocab, last_only=True)
    np.testing.assert_allclose(np.asarray(out_last), np.asarray(ref_last),
                               atol=2e-2, rtol=2e-1)

    print("KERNEL_OK")
</pallas_src>

<mosaic_0001>
module attributes {stable_mosaic.version = 11 : i64} {
  func.func @_composite_head_kernel(%arg0: i32, %arg1: memref<2xi32, #tpu.memory_space<smem>>, %arg2: memref<16x32xf32, #tpu.memory_space<vmem>>, %arg3: memref<16x1xi32, #tpu.memory_space<vmem>>, %arg4: memref<32x896xbf16, #tpu.memory_space<vmem>>, %arg5: memref<1x896xf32, #tpu.memory_space<vmem>>, %arg6: memref<128x128xbf16, #tpu.memory_space<vmem>>, %arg7: memref<1x128xf32, #tpu.memory_space<vmem>>, %arg8: memref<16x128xbf16, #tpu.memory_space<vmem>>) attributes {dimension_semantics = [#tpu.dimension_semantics<parallel>], iteration_bounds = array<i64: 2>, scalar_prefetch = 1 : i64, scratch_operands = 0 : i64, tpu.core_type = #tpu.core_type<tc>, window_params = [{transform_indices = @transform_0, window_bounds = array<i64: 16, 32>}, {transform_indices = @transform_1, window_bounds = array<i64: 16, 1>}, {pipeline_mode = #tpu.pipeline_mode<synchronous>, transform_indices = @transform_2, window_bounds = array<i64: 32, 896>}, {pipeline_mode = #tpu.pipeline_mode<synchronous>, transform_indices = @transform_3, window_bounds = array<i64: 1, 896>}, {pipeline_mode = #tpu.pipeline_mode<synchronous>, transform_indices = @transform_4, window_bounds = array<i64: 128, 128>}, {pipeline_mode = #tpu.pipeline_mode<synchronous>, transform_indices = @transform_5, window_bounds = array<i64: 1, 128>}, {transform_indices = @transform_6, window_bounds = array<i64: 16, 128>}]} {
    %0 = arith.index_cast %arg0 : i32 to index
    %1 = memref.load %arg1[%0] : memref<2xi32, #tpu.memory_space<smem>>
    %c1_i32 = arith.constant 1 : i32
    %2 = arith.cmpi eq, %1, %c1_i32 : i32
    %c3_i32 = arith.constant 3 : i32
    %3 = arith.cmpi eq, %1, %c3_i32 : i32
    %4 = arith.ori %2, %3 : i1
    %c2_i32 = arith.constant 2 : i32
    %5 = arith.cmpi sge, %1, %c2_i32 : i32
    %c0_i32 = arith.constant 0 : i32
    %6 = arith.cmpi eq, %1, %c0_i32 : i32
    %7 = arith.extui %6 : i1 to i32
    %c0_i32_0 = arith.constant 0 : i32
    %8 = arith.cmpi ne, %7, %c0_i32_0 : i32
    scf.if %8 {
      %cst = arith.constant 0.000000e+00 : bf16
      %12 = vector.broadcast %cst : bf16 to vector<16x128xbf16>
      %c0 = arith.constant 0 : index
      %c0_3 = arith.constant 0 : index
      %13 = vector.load %arg8[%c0, %c0_3] : memref<16x128xbf16, #tpu.memory_space<vmem>>, vector<16x128xbf16>
      tpu.vector_store %arg8[%c0, %c0_3], %12 {strides = array<i32>} : memref<16x128xbf16, #tpu.memory_space<vmem>>, vector<16x128xbf16>,
    } else {
    }
    %c0_i32_1 = arith.constant 0 : i32
    %9 = arith.cmpi ne, %1, %c0_i32_1 : i32
    %10 = arith.extui %9 : i1 to i32
    %c0_i32_2 = arith.constant 0 : i32
    %11 = arith.cmpi ne, %10, %c0_i32_2 : i32
    scf.if %11 {
      %c0 = arith.constant 0 : index
      %c0_3 = arith.constant 0 : index
      %12 = vector.load %arg2[%c0, %c0_3] : memref<16x32xf32, #tpu.memory_space<vmem>>, vector<16x32xf32>
      %13 = arith.truncf %12 : vector<16x32xf32> to vector<16x32xbf16>
      %c0_4 = arith.constant 0 : index
      %c0_5 = arith.constant 0 : index
      %14 = vector.load %arg3[%c0_4, %c0_5] : memref<16x1xi32, #tpu.memory_space<vmem>>, vector<16x1xi32>
      %c0_6 = arith.constant 0 : index
      %c0_7 = arith.constant 0 : index
      %15 = vector.load %arg4[%c0_6, %c0_7] : memref<32x896xbf16, #tpu.memory_space<vmem>>, vector<32x896xbf16>
      %cst = arith.constant dense<0.000000e+00> : vector<16x896xf32>
      %16 = tpu.matmul %13, %15, %cst {dimension_numbers = #tpu.dot_dimension_numbers<[1], [0], [0], [1], [0, 0, 1, 1], [], []>} : vector<16x32xbf16>, vector<32x896xbf16>, vector<16x896xf32> -> vector<16x896xf32>
      %17 = arith.extui %4 : i1 to i32
      %c0_i32_8 = arith.constant 0 : i32
      %18 = arith.cmpi ne, %17, %c0_i32_8 : i32
      scf.if %18 {
        %c0_i32_11 = arith.constant 0 : i32
        %24 = vector.broadcast %c0_i32_11 : i32 to vector<16x1xi32>
        %25 = arith.cmpi eq, %14, %24 : vector<16x1xi32>
        %c1_i32_12 = arith.constant 1 : i32
        %26 = vector.broadcast %c1_i32_12 : i32 to vector<16x1xi32>
        %27 = arith.cmpi eq, %14, %26 : vector<16x1xi32>
        %c0_i32_13 = arith.constant 0 : i32
        %28 = vector.broadcast %c0_i32_13 : i32 to vector<16x1xi32>
        %29 = arith.cmpi sge, %14, %28 : vector<16x1xi32>
        %c3_i32_14 = arith.constant 3 : i32
        %30 = vector.broadcast %c3_i32_14 : i32 to vector<16x1xi32>
        %31 = arith.cmpi slt, %14, %30 : vector<16x1xi32>
        %32 = arith.andi %29, %31 : vector<16x1xi1>
        %33 = vector.extract_strided_slice %16 {offsets = [0, 0], sizes = [16, 128], strides = [1, 1]} : vector<16x896xf32> to vector<16x128xf32>
        %34 = vector.extract_strided_slice %16 {offsets = [0, 128], sizes = [16, 128], strides = [1, 1]} : vector<16x896xf32> to vector<16x128xf32>
        %35 = vector.extract_strided_slice %16 {offsets = [0, 256], sizes = [16, 128], strides = [1, 1]} : vector<16x896xf32> to vector<16x128xf32>
        %36 = vector.shape_cast %27 : vector<16x1xi1> to vector<16x1xi1>
        %37 = vector.broadcast %36 : vector<16x1xi1> to vector<16x128xi1>
        %38 = arith.select %37, %34, %35 : vector<16x128xi1>, vector<16x128xf32>
        %39 = vector.shape_cast %25 : vector<16x1xi1> to vector<16x1xi1>
        %40 = vector.broadcast %39 : vector<16x1xi1> to vector<16x128xi1>
        %41 = arith.select %40, %33, %38 : vector<16x128xi1>, vector<16x128xf32>
        %c0_15 = arith.constant 0 : index
        %c0_16 = arith.constant 0 : index
        %42 = vector.load %arg5[%c0_15, %c0_16] : memref<1x896xf32, #tpu.memory_space<vmem>>, vector<1x128xf32>
        %c0_17 = arith.constant 0 : index
        %c128 = arith.constant 128 : index
        %43 = vector.load %arg5[%c0_17, %c128] : memref<1x896xf32, #tpu.memory_space<vmem>>, vector<1x128xf32>
        %c0_18 = arith.constant 0 : index
        %c256 = arith.constant 256 : index
        %44 = vector.load %arg5[%c0_18, %c256] : memref<1x896xf32, #tpu.memory_space<vmem>>, vector<1x128xf32>
        %45 = vector.shape_cast %27 : vector<16x1xi1> to vector<16x1xi1>
        %46 = vector.broadcast %45 : vector<16x1xi1> to vector<16x128xi1>
        %47 = vector.shape_cast %43 : vector<1x128xf32> to vector<1x128xf32>
        %48 = vector.broadcast %47 : vector<1x128xf32> to vector<16x128xf32>
        %49 = vector.shape_cast %44 : vector<1x128xf32> to vector<1x128xf32>
        %50 = vector.broadcast %49 : vector<1x128xf32> to vector<16x128xf32>
        %51 = arith.select %46, %48, %50 : vector<16x128xi1>, vector<16x128xf32>
        %52 = vector.shape_cast %25 : vector<16x1xi1> to vector<16x1xi1>
        %53 = vector.broadcast %52 : vector<16x1xi1> to vector<16x128xi1>
        %54 = vector.shape_cast %42 : vector<1x128xf32> to vector<1x128xf32>
        %55 = vector.broadcast %54 : vector<1x128xf32> to vector<16x128xf32>
        %56 = arith.select %53, %55, %51 : vector<16x128xi1>, vector<16x128xf32>
        %57 = arith.addf %41, %56 : vector<16x128xf32>
        %cst_19 = arith.constant 0.000000e+00 : f32
        %58 = vector.shape_cast %32 : vector<16x1xi1> to vector<16x1xi1>
        %59 = vector.broadcast %58 : vector<16x1xi1> to vector<16x128xi1>
        %60 = vector.broadcast %cst_19 : f32 to vector<16x128xf32>
        %61 = arith.select %59, %57, %60 : vector<16x128xi1>, vector<16x128xf32>
        %62 = arith.truncf %61 : vector<16x128xf32> to vector<16x128xbf16>
        %c0_20 = arith.constant 0 : index
        %c0_21 = arith.constant 0 : index
        %63 = vector.load %arg8[%c0_20, %c0_21] : memref<16x128xbf16, #tpu.memory_space<vmem>>, vector<16x128xbf16>
        tpu.vector_store %arg8[%c0_20, %c0_21], %62 {strides = array<i32>} : memref<16x128xbf16, #tpu.memory_space<vmem>>, vector<16x128xbf16>,
      } else {
      }
      %true = arith.constant true
      %19 = arith.xori %4, %true : i1
      %20 = arith.extui %19 : i1 to i32
      %c0_i32_9 = arith.constant 0 : i32
      %21 = arith.cmpi ne, %20, %c0_i32_9 : i32
      scf.if %21 {
        %cst_11 = arith.constant 0.000000e+00 : bf16
        %24 = vector.broadcast %cst_11 : bf16 to vector<16x128xbf16>
        %c0_12 = arith.constant 0 : index
        %c0_13 = arith.constant 0 : index
        %25 = vector.load %arg8[%c0_12, %c0_13] : memref<16x128xbf16, #tpu.memory_space<vmem>>, vector<16x128xbf16>
        tpu.vector_store %arg8[%c0_12, %c0_13], %24 {strides = array<i32>} : memref<16x128xbf16, #tpu.memory_space<vmem>>, vector<16x128xbf16>,
      } else {
      }
      %22 = arith.extui %5 : i1 to i32
      %c0_i32_10 = arith.constant 0 : i32
      %23 = arith.cmpi ne, %22, %c0_i32_10 : i32
      scf.if %23 {
        %c3_i32_11 = arith.constant 3 : i32
        %24 = vector.broadcast %c3_i32_11 : i32 to vector<16x1xi32>
        %25 = arith.cmpi eq, %14, %24 : vector<16x1xi32>
        %26 = vector.extract_strided_slice %16 {offsets = [0, 384], sizes = [16, 128], strides = [1, 1]} : vector<16x896xf32> to vector<16x128xf32>
        %c4_i32 = arith.constant 4 : i32
        %27 = vector.broadcast %c4_i32 : i32 to vector<16x1xi32>
        %28 = arith.cmpi eq, %14, %27 : vector<16x1xi32>
        %29 = vector.extract_strided_slice %16 {offsets = [0, 512], sizes = [16, 128], strides = [1, 1]} : vector<16x896xf32> to vector<16x128xf32>
        %c5_i32 = arith.constant 5 : i32
        %30 = vector.broadcast %c5_i32 : i32 to vector<16x1xi32>
        %31 = arith.cmpi eq, %14, %30 : vector<16x1xi32>
        %32 = vector.extract_strided_slice %16 {offsets = [0, 640], sizes = [16, 128], strides = [1, 1]} : vector<16x896xf32> to vector<16x128xf32>
        %33 = vector.extract_strided_slice %16 {offsets = [0, 768], sizes = [16, 128], strides = [1, 1]} : vector<16x896xf32> to vector<16x128xf32>
        %34 = vector.shape_cast %31 : vector<16x1xi1> to vector<16x1xi1>
        %35 = vector.broadcast %34 : vector<16x1xi1> to vector<16x128xi1>
        %36 = arith.select %35, %32, %33 : vector<16x128xi1>, vector<16x128xf32>
        %37 = vector.shape_cast %28 : vector<16x1xi1> to vector<16x1xi1>
        %38 = vector.broadcast %37 : vector<16x1xi1> to vector<16x128xi1>
        %39 = arith.select %38, %29, %36 : vector<16x128xi1>, vector<16x128xf32>
        %40 = vector.shape_cast %25 : vector<16x1xi1> to vector<16x1xi1>
        %41 = vector.broadcast %40 : vector<16x1xi1> to vector<16x128xi1>
        %42 = arith.select %41, %26, %39 : vector<16x128xi1>, vector<16x128xf32>
        %c0_12 = arith.constant 0 : index
        %c384 = arith.constant 384 : index
        %43 = vector.load %arg5[%c0_12, %c384] : memref<1x896xf32, #tpu.memory_space<vmem>>, vector<1x128xf32>
        %44 = vector.broadcast %43 : vector<1x128xf32> to vector<16x128xf32>
        %45 = arith.addf %42, %44 : vector<16x128xf32>
        %46 = arith.truncf %45 : vector<16x128xf32> to vector<16x128xbf16>
        %c0_13 = arith.constant 0 : index
        %c0_14 = arith.constant 0 : index
        %47 = vector.load %arg6[%c0_13, %c0_14] : memref<128x128xbf16, #tpu.memory_space<vmem>>, vector<128x128xbf16>
        %cst_15 = arith.constant dense<0.000000e+00> : vector<16x128xf32>
        %48 = tpu.matmul %46, %47, %cst_15 {dimension_numbers = #tpu.dot_dimension_numbers<[1], [0], [0], [1], [0, 0, 1, 1], [], []>} : vector<16x128xbf16>, vector<128x128xbf16>, vector<16x128xf32> -> vector<16x128xf32>
        %c0_16 = arith.constant 0 : index
        %c0_17 = arith.constant 0 : index
        %49 = vector.load %arg7[%c0_16, %c0_17] : memref<1x128xf32, #tpu.memory_space<vmem>>, vector<1x128xf32>
        %50 = vector.broadcast %49 : vector<1x128xf32> to vector<16x128xf32>
        %51 = arith.addf %48, %50 : vector<16x128xf32>
        %c3_i32_18 = arith.constant 3 : i32
        %52 = vector.broadcast %c3_i32_18 : i32 to vector<16x1xi32>
        %53 = arith.cmpi sge, %14, %52 : vector<16x1xi32>
        %54 = arith.truncf %51 : vector<16x128xf32> to vector<16x128xbf16>
        %c0_19 = arith.constant 0 : index
        %c0_20 = arith.constant 0 : index
        %55 = vector.load %arg8[%c0_19, %c0_20] : memref<16x128xbf16, #tpu.memory_space<vmem>>, vector<16x128xbf16>
        %56 = vector.shape_cast %53 : vector<16x1xi1> to vector<16x1xi1>
        %57 = vector.broadcast %56 : vector<16x1xi1> to vector<16x128xi1>
        %58 = arith.select %57, %54, %55 : vector<16x128xi1>, vector<16x128xbf16>
        %c0_21 = arith.constant 0 : index
        %c0_22 = arith.constant 0 : index
        %59 = vector.load %arg8[%c0_21, %c0_22] : memref<16x128xbf16, #tpu.memory_space<vmem>>, vector<16x128xbf16>
        tpu.vector_store %arg8[%c0_21, %c0_22], %58 {strides = array<i32>} : memref<16x128xbf16, #tpu.memory_space<vmem>>, vector<16x128xbf16>,
      } else {
      }
    } else {
    }
    return
  }
  func.func @transform_0(%arg0: i32, %arg1: memref<2xi32, #tpu.memory_space<smem>>) -> (i32, i32) {
    %c0_i32 = arith.constant 0 : i32
    %c0_i32_0 = arith.constant 0 : i32
    return %arg0, %c0_i32 : i32, i32
  }
  func.func @transform_1(%arg0: i32, %arg1: memref<2xi32, #tpu.memory_space<smem>>) -> (i32, i32) {
    %c0_i32 = arith.constant 0 : i32
    %c0_i32_0 = arith.constant 0 : i32
    return %arg0, %c0_i32 : i32, i32
  }
  func.func @transform_2(%arg0: i32, %arg1: memref<2xi32, #tpu.memory_space<smem>>) -> (i32, i32) {
    %c0_i32 = arith.constant 0 : i32
    %c0_i32_0 = arith.constant 0 : i32
    %c0_i32_1 = arith.constant 0 : i32
    return %c0_i32, %c0_i32_0 : i32, i32
  }
  func.func @transform_3(%arg0: i32, %arg1: memref<2xi32, #tpu.memory_space<smem>>) -> (i32, i32) {
    %c0_i32 = arith.constant 0 : i32
    %c0_i32_0 = arith.constant 0 : i32
    %c0_i32_1 = arith.constant 0 : i32
    return %c0_i32, %c0_i32_0 : i32, i32
  }
  func.func @transform_4(%arg0: i32, %arg1: memref<2xi32, #tpu.memory_space<smem>>) -> (i32, i32) {
    %c0_i32 = arith.constant 0 : i32
    %c0_i32_0 = arith.constant 0 : i32
    %c0_i32_1 = arith.constant 0 : i32
    return %c0_i32, %c0_i32_0 : i32, i32
  }
  func.func @transform_5(%arg0: i32, %arg1: memref<2xi32, #tpu.memory_space<smem>>) -> (i32, i32) {
    %c0_i32 = arith.constant 0 : i32
    %c0_i32_0 = arith.constant 0 : i32
    %c0_i32_1 = arith.constant 0 : i32
    return %c0_i32, %c0_i32_0 : i32, i32
  }
  func.func @transform_6(%arg0: i32, %arg1: memref<2xi32, #tpu.memory_space<smem>>) -> (i32, i32) {
    %c0_i32 = arith.constant 0 : i32
    %c0_i32_0 = arith.constant 0 : i32
    return %arg0, %c0_i32 : i32, i32
  }
}

</mosaic_0001>

<llo_original>
// kernel: _device_forward.1
$region0: #{_device_forward.1}
  #allocation0 [shape = 'u32[]', space=smem, size = 0x4, offset = 0x4, fixed_abs, tag = 'smem constant byte address 0x4 - core index']
  #allocation1 [shape = 'u32[144,128]{1,0:T(1,128)}', space=vmem, size = 0x12000, scoped, tag = 'internal scratch']
  #allocation2 [shape = 's32[1]{0}', space=sflag, size = 0x4, scoped, tag = 'scoped memory for _device_forward.1']
  #allocation3 [shape = 'u8[512]{0}', space=smem, size = 0x200, scoped, tag = 'prefetched SMEM operand 0']
  %s0 = inlined_call_operand.vmem [shape: s32[2], index: 0, kind: input, shape index: {}]
  %s1 = inlined_call_operand.vmem [shape: f32[32,32], index: 1, kind: input, shape index: {}]
  %s2 = inlined_call_operand.vmem [shape: s32[32,1], index: 2, kind: input, shape index: {}]
  %s3 = inlined_call_operand.vmem [shape: bf16[32,896], index: 3, kind: input, shape index: {}]
  %s4 = inlined_call_operand.vmem [shape: f32[1,896], index: 4, kind: input, shape index: {}]
  %s5 = inlined_call_operand.vmem [shape: bf16[128,128], index: 5, kind: input, shape index: {}]
  %s6 = inlined_call_operand.vmem [shape: f32[1,128], index: 6, kind: input, shape index: {}]
  %s7 = inlined_call_operand.vmem [shape: bf16[32,128], index: 7, kind: output, shape index: {}]
  %s8 = sld [smem:[#allocation0]]
  $region77: #{_device_forward.1} parent=0
    _
  %s10 = ssub.s32 1, %s8
  %s11 = scalar_select 0, %s10, %s8
  %s12 = sshll.u32 %s0, 4
  %s13 = int_to_ptr.vmem [resolvable:$true] %s12
  %15 = dma.vmem_to_smem %s13, 16, [#allocation3], [#allocation2]
  %16 = dma.done [#allocation2], 16
  %17 = sfence
  loop: start=0, step=1, limit=4
  $region2: #{_device_forward.1} parent=0 // loop_pre_header
    _
  $region3: #{_device_forward.1} parent=0 // loop_header
    %s19 = sphi 0, %s23
    %p20 = scmp.ge.s32.totalorder %s19, 4
    %s29 = sphi 0, %s31
    %s32 = sphi 0, %s29
    %s33 = sphi 0, %s32
    %s49 = sphi 0, %s33
    %s55 = sphi 0, %s57
    %s58 = sphi 0, %s55
    %s59 = sphi 0, %s58
    %s75 = sphi 0, %s59
    %s79 = sphi 0, %s79
    %s81 = sphi 0, %s79
    %s82 = sphi 0, %s81
    %s96 = sphi 0, %s82
    %s100 = sphi 0, %s100
    %s102 = sphi 0, %s100
    %s103 = sphi 0, %s102
    %s117 = sphi 0, %s103
    %s121 = sphi 0, %s121
    %s123 = sphi 0, %s121
    %s124 = sphi 0, %s123
    %s138 = sphi 0, %s124
    %s142 = sphi 0, %s142
    %s144 = sphi 0, %s142
    %s145 = sphi 0, %s144
    %s159 = sphi 0, %s145
    %s165 = sphi 0, %s167
    %s168 = sphi 0, %s165
    %s169 = sphi 0, %s168
    %s185 = sphi 0, %s169
  $region4: #{_device_forward.1} parent=0 // loop_header_branch
    %22 = sbr.rel (%p20) target = $region8
  $region5: #{_device_forward.1} parent=0 // loop_body
    %s24 = ssub.s32 %s19, 1
    %s25 = ssub.s32 %s19, 2
    %s26 = sadd.s32 %s19, 1
    %s27 = ssub.s32 %s19, %s26
    %p28 = scmp.eq.s32.totalorder %s27, 0
    %s30 = sadd.s32 %s29, 1
    %s31 = scalar_select %p28, %s29, %s30
    %p34 = pneg %p28
    %p35 = scmp.eq.s32.totalorder %s19, 1
    %p36 = por %p34, %p35
    %p37 = scmp.ne.s32.totalorder %s29, %s32
    %p38 = scmp.eq.s32.totalorder %s19, 0
    %p39 = por %p37, %p38
    %p40 = scmp.ne.s32.totalorder %s29, %s32
    %p41 = scmp.eq.s32.totalorder %s24, 1
    %p42 = por %p40, %p41
    %p43 = scmp.ne.s32.totalorder %s32, %s33
    %p44 = scmp.eq.s32.totalorder %s24, 0
    %p45 = por %p43, %p44
    %p46 = scmp.ne.s32.totalorder %s32, %s33
    %p47 = scmp.eq.s32.totalorder %s25, 1
    %p48 = por %p46, %p47
    %p50 = scmp.ne.s32.totalorder %s33, %s49
    %p51 = scmp.eq.s32.totalorder %s25, 0
    %p52 = por %p50, %p51
    %s53 = ssub.s32 %s19, %s26
    %p54 = scmp.eq.s32.totalorder %s53, 0
    %s56 = sadd.s32 %s55, 1
    %s57 = scalar_select %p54, %s55, %s56
    %p60 = pneg %p54
    %p61 = scmp.eq.s32.totalorder %s19, 1
    %p62 = por %p60, %p61
    %p63 = scmp.ne.s32.totalorder %s55, %s58
    %p64 = scmp.eq.s32.totalorder %s19, 0
    %p65 = por %p63, %p64
    %p66 = scmp.ne.s32.totalorder %s55, %s58
    %p67 = scmp.eq.s32.totalorder %s24, 1
    %p68 = por %p66, %p67
    %p69 = scmp.ne.s32.totalorder %s58, %s59
    %p70 = scmp.eq.s32.totalorder %s24, 0
    %p71 = por %p69, %p70
    %p72 = scmp.ne.s32.totalorder %s58, %s59
    %p73 = scmp.eq.s32.totalorder %s25, 1
    %p74 = por %p72, %p73
    %p76 = scmp.ne.s32.totalorder %s59, %s75
    %p77 = scmp.eq.s32.totalorder %s25, 0
    %p78 = por %p76, %p77
    %s80 = sadd.s32 %s79, 1
    %p83 = scmp.eq.s32.totalorder %s19, 1
    %p84 = scmp.ne.s32.totalorder %s79, %s81
    %p85 = scmp.eq.s32.totalorder %s19, 0
    %p86 = por %p84, %p85
    %p87 = scmp.ne.s32.totalorder %s79, %s81
    %p88 = scmp.eq.s32.totalorder %s24, 1
    %p89 = por %p87, %p88
    %p90 = scmp.ne.s32.totalorder %s81, %s82
    %p91 = scmp.eq.s32.totalorder %s24, 0
    %p92 = por %p90, %p91
    %p93 = scmp.ne.s32.totalorder %s81, %s82
    %p94 = scmp.eq.s32.totalorder %s25, 1
    %p95 = por %p93, %p94
    %p97 = scmp.ne.s32.totalorder %s82, %s96
    %p98 = scmp.eq.s32.totalorder %s25, 0
    %p99 = por %p97, %p98
    %s101 = sadd.s32 %s100, 1
    %p104 = scmp.eq.s32.totalorder %s19, 1
    %p105 = scmp.ne.s32.totalorder %s100, %s102
    %p106 = scmp.eq.s32.totalorder %s19, 0
    %p107 = por %p105, %p106
    %p108 = scmp.ne.s32.totalorder %s100, %s102
    %p109 = scmp.eq.s32.totalorder %s24, 1
    %p110 = por %p108, %p109
    %p111 = scmp.ne.s32.totalorder %s102, %s103
    %p112 = scmp.eq.s32.totalorder %s24, 0
    %p113 = por %p111, %p112
    %p114 = scmp.ne.s32.totalorder %s102, %s103
    %p115 = scmp.eq.s32.totalorder %s25, 1
    %p116 = por %p114, %p115
    %p118 = scmp.ne.s32.totalorder %s103, %s117
    %p119 = scmp.eq.s32.totalorder %s25, 0
    %p120 = por %p118, %p119
    %s122 = sadd.s32 %s121, 1
    %p125 = scmp.eq.s32.totalorder %s19, 1
    %p126 = scmp.ne.s32.totalorder %s121, %s123
    %p127 = scmp.eq.s32.totalorder %s19, 0
    %p128 = por %p126, %p127
    %p129 = scmp.ne.s32.totalorder %s121, %s123
    %p130 = scmp.eq.s32.totalorder %s24, 1
    %p131 = por %p129, %p130
    %p132 = scmp.ne.s32.totalorder %s123, %s124
    %p133 = scmp.eq.s32.totalorder %s24, 0
    %p134 = por %p132, %p133
    %p135 = scmp.ne.s32.totalorder %s123, %s124
    %p136 = scmp.eq.s32.totalorder %s25, 1
    %p137 = por %p135, %p136
    %p139 = scmp.ne.s32.totalorder %s124, %s138
    %p140 = scmp.eq.s32.totalorder %s25, 0
    %p141 = por %p139, %p140
    %s143 = sadd.s32 %s142, 1
    %p146 = scmp.eq.s32.totalorder %s19, 1
    %p147 = scmp.ne.s32.totalorder %s142, %s144
    %p148 = scmp.eq.s32.totalorder %s19, 0
    %p149 = por %p147, %p148
    %p150 = scmp.ne.s32.totalorder %s142, %s144
    %p151 = scmp.eq.s32.totalorder %s24, 1
    %p152 = por %p150, %p151
    %p153 = scmp.ne.s32.totalorder %s144, %s145
    %p154 = scmp.eq.s32.totalorder %s24, 0
    %p155 = por %p153, %p154
    %p156 = scmp.ne.s32.totalorder %s144, %s145
    %p157 = scmp.eq.s32.totalorder %s25, 1
    %p158 = por %p156, %p157
    %p160 = scmp.ne.s32.totalorder %s145, %s159
    %p161 = scmp.eq.s32.totalorder %s25, 0
    %p162 = por %p160, %p161
    %s163 = ssub.s32 %s19, %s26
    %p164 = scmp.eq.s32.totalorder %s163, 0
    %s166 = sadd.s32 %s165, 1
    %s167 = scalar_select %p164, %s165, %s166
    %p170 = pneg %p164
    %p171 = scmp.eq.s32.totalorder %s19, 1
    %p172 = por %p170, %p171
    %p173 = scmp.ne.s32.totalorder %s165, %s168
    %p174 = scmp.eq.s32.totalorder %s19, 0
    %p175 = por %p173, %p174
    %p176 = scmp.ne.s32.totalorder %s165, %s168
    %p177 = scmp.eq.s32.totalorder %s24, 1
    %p178 = por %p176, %p177
    %p179 = scmp.ne.s32.totalorder %s168, %s169
    %p180 = scmp.eq.s32.totalorder %s24, 0
    %p181 = por %p179, %p180
    %p182 = scmp.ne.s32.totalorder %s168, %s169
    %p183 = scmp.eq.s32.totalorder %s25, 1
    %p184 = por %p182, %p183
    %p186 = scmp.ne.s32.totalorder %s169, %s185
    %p187 = scmp.eq.s32.totalorder %s25, 0
    %p188 = por %p186, %p187
    %p189 = scmp.le.s32.totalorder 1, %s19
    %p190 = scmp.lt.s32.totalorder %s19, 3
    %p191 = pnand %p189, %p190
    %p192 = pneg %p191
    // Predicated region
    $region9: #{_device_forward.1} parent=5 // pred_check
      _
    $region10: #{_device_forward.1} parent=5 // pred_check_branch
      %194 = sbr.rel (%p191) target = $region12
    $region11: #{_device_forward.1} parent=5 // pred_region
      %s195 = ssub.s32 %s19, 1
      // Predicated region
      $region13: #{_device_forward.1} parent=11 // pred_check
        %p196 = pneg %p92
      $region14: #{_device_forward.1} parent=11 // pred_check_branch
        %198 = sbr.rel (%p196) target = $region16
      $region15: #{_device_forward.1} parent=11 // pred_region
        _
      $region16: #{_device_forward.1} parent=11 // pred_fallthru
        _
      // Predicated region
      $region17: #{_device_forward.1} parent=11 // pred_check
        %p199 = pneg %p113
      $region18: #{_device_forward.1} parent=11 // pred_check_branch
        %201 = sbr.rel (%p199) target = $region20
      $region19: #{_device_forward.1} parent=11 // pred_region
        _
      $region20: #{_device_forward.1} parent=11 // pred_fallthru
        _
      // Predicated region
      $region21: #{_device_forward.1} parent=11 // pred_check
        %p202 = pneg %p134
      $region22: #{_device_forward.1} parent=11 // pred_check_branch
        %204 = sbr.rel (%p202) target = $region24
      $region23: #{_device_forward.1} parent=11 // pred_region
        _
      $region24: #{_device_forward.1} parent=11 // pred_fallthru
        _
      // Predicated region
      $region25: #{_device_forward.1} parent=11 // pred_check
        %p205 = pneg %p155
      $region26: #{_device_forward.1} parent=11 // pred_check_branch
        %207 = sbr.rel (%p205) target = $region28
      $region27: #{_device_forward.1} parent=11 // pred_region
        _
      $region28: #{_device_forward.1} parent=11 // pred_fallthru
        _
    $region12: #{_device_forward.1} parent=5 // pred_fallthru
      _
    %p208 = scmp.lt.s32.totalorder %s19, 2
    // Predicated region
    $region29: #{_device_forward.1} parent=5 // pred_check
      %p209 = pneg %p208
    $region30: #{_device_forward.1} parent=5 // pred_check_branch
      %211 = sbr.rel (%p209) target = $region32
    $region31: #{_device_forward.1} parent=5 // pred_region
      // Predicated region
      $region33: #{_device_forward.1} parent=31 // pred_check
        %p212 = pneg %p39
      $region34: #{_device_forward.1} parent=31 // pred_check_branch
        %214 = sbr.rel (%p212) target = $region36
      $region35: #{_device_forward.1} parent=31 // pred_region
        %s215 = smul.u32 2, %s19
        %p216 = scmp.lt.s32.totalorder %s215, 3
        %s217 = scalar_select %p216, %s215, 3
        %s218 = smul.addr %s217, 8
        %s219 = scalar_lea.vmem %s1, %s218
        %s220 = smul.u32 2, %s19
      $region36: #{_device_forward.1} parent=31 // pred_fallthru
        _
      // Predicated region
      $region37: #{_device_forward.1} parent=31 // pred_check
        %p221 = pneg %p65
      $region38: #{_device_forward.1} parent=31 // pred_check_branch
        %223 = sbr.rel (%p221) target = $region40
      $region39: #{_device_forward.1} parent=31 // pred_region
        %s224 = smul.u32 2, %s19
        %p225 = scmp.lt.s32.totalorder %s224, 3
        %s226 = scalar_select %p225, %s224, 3
        %s227 = smul.addr %s226, 8
        %s228 = scalar_lea.vmem %s2, %s227
        %s229 = smul.u32 2, %s19
      $region40: #{_device_forward.1} parent=31 // pred_fallthru
        _
    $region32: #{_device_forward.1} parent=5 // pred_fallthru
      _
    %p230 = scmp.le.s32.totalorder 1, %s19
    %p231 = scmp.lt.s32.totalorder %s19, 3
    %p232 = pnand %p230, %p231
    %p233 = pneg %p232
    // Predicated region
    $region41: #{_device_forward.1} parent=5 // pred_check
      _
    $region42: #{_device_forward.1} parent=5 // pred_check_branch
      %235 = sbr.rel (%p232) target = $region44
    $region43: #{_device_forward.1} parent=5 // pred_region
      %s236 = ssub.s32 %s19, 1
      %s237 = smul.u32 2, %s24
      %p238 = scmp.lt.s32.totalorder %s237, 3
      %s239 = scalar_select %p238, %s237, 3
      %s240 = smul.addr %s239, 8
      %s241 = scalar_lea.vmem %s1, %s240
      %p242 = pneg %p45
      %p243 = pneg %p42
      %s244 = smul.u32 2, %s24
      %p245 = scmp.lt.s32.totalorder %s244, 3
      %s246 = scalar_select %p245, %s244, 3
      %s247 = smul.addr %s246, 8
      %s248 = scalar_lea.vmem %s2, %s247
      %p249 = pneg %p71
      %p250 = pneg %p68
      %p251 = pneg %p92
      %p252 = pneg %p89
      %p253 = pneg %p113
      %p254 = pneg %p110
      %p255 = pneg %p134
      %p256 = pneg %p131
      %p257 = pneg %p155
      %p258 = pneg %p152
      %p259 = pneg %p181
      %p260 = pneg %p178
      %s261 = smul.u32 2, %s24
      %p262 = scmp.lt.s32.totalorder %s261, 3
      %s263 = scalar_select %p262, %s261, 3
      %s264 = smul.addr %s263, 4
      %s265 = scalar_lea.vmem %s7, %s264
      %s266 = smul.u32 2, %s24
      %p267 = scmp.lt.s32.totalorder %s266, 3
      %s268 = scalar_select %p267, %s266, 3
      %s269 = smul.addr %s268, 8
      %s270 = scalar_lea.vmem %s1, %s269
      %s271 = smul.u32 2, %s24
      %s272 = smul.u32 2, %s24
      %p273 = scmp.lt.s32.totalorder %s272, 3
      %s274 = scalar_select %p273, %s272, 3
      %s275 = smul.addr %s274, 8
      %s276 = scalar_lea.vmem %s2, %s275
      %s277 = smul.u32 2, %s24
      %s278 = smul.u32 2, %s24
      %p279 = scmp.lt.s32.totalorder %s278, 3
      %s280 = scalar_select %p279, %s278, 3
      %s281 = smul.addr %s280, 4
      %s282 = scalar_lea.vmem %s7, %s281
      %s283 = smul.u32 2, %s24
      %s287 = sld [smem:[#allocation3 + %s24]]
      %p288 = scmp.eq.s32.totalorder %s287, 1
      %p289 = scmp.eq.s32.totalorder %s287, 3
      %p290 = por %p288, %p289
      %p291 = scmp.ge.s32.totalorder %s287, 2
      %p292 = scmp.eq.s32.totalorder %s287, 0
      // Predicated region
      $region45: #{_device_forward.1} parent=43 // pred_check
        %p293 = pneg %p292
      $region46: #{_device_forward.1} parent=43 // pred_check_branch
        %295 = sbr.rel (%p293) target = $region48
      $region47: #{_device_forward.1} parent=43 // pred_region
        %296 = vst [vmem:[%s282] sm:$0xf] 0
        %297 = vst [vmem:[%s282 + $0x4] sm:$0xf] 0
      $region48: #{_device_forward.1} parent=43 // pred_fallthru
        _
      %p298 = scmp.ne.s32.totalorder %s287, 0
      // Predicated region
      $region49: #{_device_forward.1} parent=43 // pred_check
        %p299 = pneg %p298
      $region50: #{_device_forward.1} parent=43 // pred_check_branch
        %301 = sbr.rel (%p299) target = $region52
      $region51: #{_device_forward.1} parent=43 // pred_region
        %v302 = vld [vmem:[%s270] sm:$0xff]
        %v303 = vld [vmem:[%s270 + $0x8] sm:$0xff]
        %v304 = vpack.c.bf16 %v303, %v302
        %v305 = vld [vmem:[%s276] sm:$0xff]
        %v306 = vld [vmem:[%s276 + $0x8] sm:$0xff]
        %v307 = vld [vmem:[%s3] sm:$0xff]
        %v308 = vld [vmem:[%s3 + $0x8] sm:$0xff]
        %v309 = vld [vmem:[%s3 + $0x10] sm:$0xff]
        %v310 = vld [vmem:[%s3 + $0x18] sm:$0xf]
        %v311 = vld [vmem:[%s3 + $0x1c] sm:$0xff]
        %v312 = vld [vmem:[%s3 + $0x24] sm:$0xff]
        %v313 = vld [vmem:[%s3 + $0x2c] sm:$0xff]
        %v314 = vld [vmem:[%s3 + $0x34] sm:$0xf]
        %v315 = vld [vmem:[%s3 + $0x38] sm:$0xff]
        %v316 = vld [vmem:[%s3 + $0x40] sm:$0xff]
        %v317 = vld [vmem:[%s3 + $0x48] sm:$0xff]
        %v318 = vld [vmem:[%s3 + $0x50] sm:$0xf]
        %v319 = vld [vmem:[%s3 + $0x54] sm:$0xff]
        %v320 = vld [vmem:[%s3 + $0x5c] sm:$0xff]
        %v321 = vld [vmem:[%s3 + $0x64] sm:$0xff]
        %v322 = vld [vmem:[%s3 + $0x6c] sm:$0xf]
        %v339 = vunpack.c.l.b16 %v307
        %v340 = vunpack.c.h.b16 %v307
        %v341 = vunpack.c.l.b16 %v308
        %v342 = vunpack.c.h.b16 %v308
        %v343 = vunpack.c.l.b16 %v309
        %v344 = vunpack.c.h.b16 %v309
        %v345 = vunpack.c.l.b16 %v310
        %v346 = vunpack.c.l.b16 %v311
        %v347 = vunpack.c.h.b16 %v311
        %v348 = vunpack.c.l.b16 %v312
        %v349 = vunpack.c.h.b16 %v312
        %v350 = vunpack.c.l.b16 %v313
        %v351 = vunpack.c.h.b16 %v313
        %v352 = vunpack.c.l.b16 %v314
        %v353 = vunpack.c.l.b16 %v315
        %v354 = vunpack.c.h.b16 %v315
        %v355 = vunpack.c.l.b16 %v316
        %v356 = vunpack.c.h.b16 %v316
        %v357 = vunpack.c.l.b16 %v317
        %v358 = vunpack.c.h.b16 %v317
        %v359 = vunpack.c.l.b16 %v318
        %v360 = vunpack.c.l.b16 %v319
        %v361 = vunpack.c.h.b16 %v319
        %v362 = vunpack.c.l.b16 %v320
        %v363 = vunpack.c.h.b16 %v320
        %v364 = vunpack.c.l.b16 %v321
        %v365 = vunpack.c.h.b16 %v321
        %v366 = vunpack.c.l.b16 %v322
        %v367 = vpack.c.b16 %v346, %v339
        %v368 = vpack.c.b16 %v347, %v340
        %v369 = vpack.c.b16 %v348, %v341
        %v370 = vpack.c.b16 %v349, %v342
        %v371 = vpack.c.b16 %v350, %v343
        %v372 = vpack.c.b16 %v351, %v344
        %v373 = vpack.c.b16 %v352, %v345
        %v374 = vpack.c.b16 %v360, %v353
        %v375 = vpack.c.b16 %v361, %v354
        %v376 = vpack.c.b16 %v362, %v355
        %v377 = vpack.c.b16 %v363, %v356
        %v378 = vpack.c.b16 %v364, %v357
        %v379 = vpack.c.b16 %v365, %v358
        %v380 = vpack.c.b16 %v366, %v359
        %vm395 = vcmask 261120
        %v397 = vsel %vm395, %v304, 0
        %399 = vmatprep.subr.bf16.mxu0 %v368
        %400 = vmatpush1.bf16.msra.mxu0 %v367
        %401 = vmatprep.subr.bf16.mxu0 %v375
        %402 = vmatpush1.bf16.msra.mxu0 %v374
        %403 = vmatprep.subr.bf16.mxu0 0
        %404 = vmatpush1.bf16.msra.mxu0 0
        %405 = vmatprep.subr.bf16.mxu0 0
        %406 = vmatpush1.bf16.msra.mxu0 0
        %407 = vmatprep.subr.bf16.mxu0 0
        %408 = vmatpush1.bf16.msra.mxu0 0
        %409 = vmatprep.subr.bf16.mxu0 0
        %410 = vmatpush1.bf16.msra.mxu0 0
        %411 = vmatprep.subr.bf16.mxu0 0
        %412 = vmatpush1.bf16.msra.mxu0 0
        %413 = vmatprep.subr.bf16.mxu0 0
        %414 = vmatpush1.bf16.msra.mxu0 0
        %415 = vmatprep.subr.bf16.mxu0 0
        %416 = vmatpush1.bf16.msra.mxu0 0
        %417 = vmatprep.subr.bf16.mxu0 0
        %418 = vmatpush1.bf16.msra.mxu0 0
        %419 = vmatprep.subr.bf16.mxu0 0
        %420 = vmatpush1.bf16.msra.mxu0 0
        %421 = vmatprep.subr.bf16.mxu0 0
        %422 = vmatpush1.bf16.msra.mxu0 0
        %423 = vmatprep.subr.bf16.mxu0 0
        %424 = vmatpush1.bf16.msra.mxu0 0
        %425 = vmatprep.subr.bf16.mxu0 0
        %426 = vmatpush1.bf16.msra.mxu0 0
        %427 = vmatprep.subr.bf16.mxu0 0
        %428 = vmatpush1.bf16.msra.mxu0 0
        %429 = vmatprep.subr.bf16.mxu0 0
        %430 = vmatpush1.bf16.msra.mxu0 0
        %431 = vmatprep.mubr.bf16.mxu0 0
        %432 = vmatmul.mubr.bf16.gmra.mrb[0].mxu0 %v397
        %v433 = vpop.f32.mrb[0].mxu0
        %v434 = vadd.f32 0.0, %v433
        %v435 = vpop.f32.mrb[0].mxu0
        %v436 = vadd.f32 0.0, %v435
        %v437 = vpop.f32.mrb[0].mxu0
        %v438 = vadd.f32 0.0, %v437
        %v439 = vpop.f32.mrb[0].mxu0
        %v440 = vadd.f32 0.0, %v439
        %441 = vdwg.mxu0
        %442 = vmatprep.subr.bf16.mxu0 %v370
        %443 = vmatpush1.bf16.msra.mxu0 %v369
        %444 = vmatprep.subr.bf16.mxu0 %v377
        %445 = vmatpush1.bf16.msra.mxu0 %v376
        %446 = vmatprep.subr.bf16.mxu0 0
        %447 = vmatpush1.bf16.msra.mxu0 0
        %448 = vmatprep.subr.bf16.mxu0 0
        %449 = vmatpush1.bf16.msra.mxu0 0
        %450 = vmatprep.subr.bf16.mxu0 0
        %451 = vmatpush1.bf16.msra.mxu0 0
        %452 = vmatprep.subr.bf16.mxu0 0
        %453 = vmatpush1.bf16.msra.mxu0 0
        %454 = vmatprep.subr.bf16.mxu0 0
        %455 = vmatpush1.bf16.msra.mxu0 0
        %456 = vmatprep.subr.bf16.mxu0 0
        %457 = vmatpush1.bf16.msra.mxu0 0
        %458 = vmatprep.subr.bf16.mxu0 0
        %459 = vmatpush1.bf16.msra.mxu0 0
        %460 = vmatprep.subr.bf16.mxu0 0
        %461 = vmatpush1.bf16.msra.mxu0 0
        %462 = vmatprep.subr.bf16.mxu0 0
        %463 = vmatpush1.bf16.msra.mxu0 0
        %464 = vmatprep.subr.bf16.mxu0 0
        %465 = vmatpush1.bf16.msra.mxu0 0
        %466 = vmatprep.subr.bf16.mxu0 0
        %467 = vmatpush1.bf16.msra.mxu0 0
        %468 = vmatprep.subr.bf16.mxu0 0
        %469 = vmatpush1.bf16.msra.mxu0 0
        %470 = vmatprep.subr.bf16.mxu0 0
        %471 = vmatpush1.bf16.msra.mxu0 0
        %472 = vmatprep.subr.bf16.mxu0 0
        %473 = vmatpush1.bf16.msra.mxu0 0
        %474 = vmatprep.mubr.bf16.mxu0 0
        %475 = vmatmul.mubr.bf16.gmra.mrb[0].mxu0 %v397
        %v476 = vpop.f32.mrb[0].mxu0
        %v477 = vadd.f32 0.0, %v476
        %v478 = vpop.f32.mrb[0].mxu0
        %v479 = vadd.f32 0.0, %v478
        %v480 = vpop.f32.mrb[0].mxu0
        %v481 = vadd.f32 0.0, %v480
        %v482 = vpop.f32.mrb[0].mxu0
        %v483 = vadd.f32 0.0, %v482
        %484 = vdwg.mxu0
        %485 = vmatprep.subr.bf16.mxu0 %v372
        %486 = vmatpush1.bf16.msra.mxu0 %v371
        %487 = vmatprep.subr.bf16.mxu0 %v379
        %488 = vmatpush1.bf16.msra.mxu0 %v378
        %489 = vmatprep.subr.bf16.mxu0 0
        %490 = vmatpush1.bf16.msra.mxu0 0
        %491 = vmatprep.subr.bf16.mxu0 0
        %492 = vmatpush1.bf16.msra.mxu0 0
        %493 = vmatprep.subr.bf16.mxu0 0
        %494 = vmatpush1.bf16.msra.mxu0 0
        %495 = vmatprep.subr.bf16.mxu0 0
        %496 = vmatpush1.bf16.msra.mxu0 0
        %497 = vmatprep.subr.bf16.mxu0 0
        %498 = vmatpush1.bf16.msra.mxu0 0
        %499 = vmatprep.subr.bf16.mxu0 0
        %500 = vmatpush1.bf16.msra.mxu0 0
        %501 = vmatprep.subr.bf16.mxu0 0
        %502 = vmatpush1.bf16.msra.mxu0 0
        %503 = vmatprep.subr.bf16.mxu0 0
        %504 = vmatpush1.bf16.msra.mxu0 0
        %505 = vmatprep.subr.bf16.mxu0 0
        %506 = vmatpush1.bf16.msra.mxu0 0
        %507 = vmatprep.subr.bf16.mxu0 0
        %508 = vmatpush1.bf16.msra.mxu0 0
        %509 = vmatprep.subr.bf16.mxu0 0
        %510 = vmatpush1.bf16.msra.mxu0 0
        %511 = vmatprep.subr.bf16.mxu0 0
        %512 = vmatpush1.bf16.msra.mxu0 0
        %513 = vmatprep.subr.bf16.mxu0 0
        %514 = vmatpush1.bf16.msra.mxu0 0
        %515 = vmatprep.subr.bf16.mxu0 0
        %516 = vmatpush1.bf16.msra.mxu0 0
        %517 = vmatprep.mubr.bf16.mxu0 0
        %518 = vmatmul.mubr.bf16.gmra.mrb[0].mxu0 %v397
        %v519 = vpop.f32.mrb[0].mxu0
        %v520 = vadd.f32 0.0, %v519
        %v521 = vpop.f32.mrb[0].mxu0
        %v522 = vadd.f32 0.0, %v521
        %v523 = vpop.f32.mrb[0].mxu0
        %v524 = vadd.f32 0.0, %v523
        %v525 = vpop.f32.mrb[0].mxu0
        %v526 = vadd.f32 0.0, %v525
        %527 = vdwg.mxu0
        %528 = vmatprep.subr.bf16.mxu0 0
        %529 = vmatpush1.bf16.msra.mxu0 %v373
        %530 = vmatprep.subr.bf16.mxu0 0
        %531 = vmatpush1.bf16.msra.mxu0 %v380
        %532 = vmatprep.subr.bf16.mxu0 0
        %533 = vmatpush1.bf16.msra.mxu0 0
        %534 = vmatprep.subr.bf16.mxu0 0
        %535 = vmatpush1.bf16.msra.mxu0 0
        %536 = vmatprep.subr.bf16.mxu0 0
        %537 = vmatpush1.bf16.msra.mxu0 0
        %538 = vmatprep.subr.bf16.mxu0 0
        %539 = vmatpush1.bf16.msra.mxu0 0
        %540 = vmatprep.subr.bf16.mxu0 0
        %541 = vmatpush1.bf16.msra.mxu0 0
        %542 = vmatprep.subr.bf16.mxu0 0
        %543 = vmatpush1.bf16.msra.mxu0 0
        %544 = vmatprep.subr.bf16.mxu0 0
        %545 = vmatpush1.bf16.msra.mxu0 0
        %546 = vmatprep.subr.bf16.mxu0 0
        %547 = vmatpush1.bf16.msra.mxu0 0
        %548 = vmatprep.subr.bf16.mxu0 0
        %549 = vmatpush1.bf16.msra.mxu0 0
        %550 = vmatprep.subr.bf16.mxu0 0
        %551 = vmatpush1.bf16.msra.mxu0 0
        %552 = vmatprep.subr.bf16.mxu0 0
        %553 = vmatpush1.bf16.msra.mxu0 0
        %554 = vmatprep.subr.bf16.mxu0 0
        %555 = vmatpush1.bf16.msra.mxu0 0
        %556 = vmatprep.subr.bf16.mxu0 0
        %557 = vmatpush1.bf16.msra.mxu0 0
        %558 = vmatprep.subr.bf16.mxu0 0
        %559 = vmatpush1.bf16.msra.mxu0 0
        %560 = vmatprep.mubr.bf16.mxu0 0
        %561 = vmatmul.mubr.bf16.gmra.mrb[0].mxu0 %v397
        %v562 = vpop.f32.mrb[0].mxu0
        %v563 = vadd.f32 0.0, %v562
        %v564 = vpop.f32.mrb[0].mxu0
        %v565 = vpop.f32.mrb[0].mxu0
        %v566 = vadd.f32 0.0, %v565
        %v567 = vpop.f32.mrb[0].mxu0
        %568 = vdwg.mxu0
        // Predicated region
        $region53: #{_device_forward.1} parent=51 // pred_check
          %p569 = pneg %p290
        $region54: #{_device_forward.1} parent=51 // pred_check_branch
          %571 = sbr.rel (%p569) target = $region56
        $region55: #{_device_forward.1} parent=51 // pred_region
          %vm572 = vcmp.eq.s32.totalorder %v305, 0
          %vm573 = vcmp.eq.s32.totalorder %v306, 0
          %vm574 = vcmp.eq.s32.totalorder %v305, 1
          %vm575 = vcmp.eq.s32.totalorder %v306, 1
          %vm576 = vcmp.ge.s32.totalorder %v305, 0
          %vm577 = vcmp.ge.s32.totalorder %v306, 0
          %vm578 = vcmp.lt.s32.totalorder %v305, 3
          %vm579 = vcmp.lt.s32.totalorder %v306, 3
          %vm580 = vmand %vm576, %vm578
          %vm581 = vmand %vm577, %vm579
          %v582 = vsel %vm574, 1, 0
          %v583 = vsel %vm575, 1, 0
          %584 = vset.pattern.permute.xlu0 0
          %585 = vperm.xlu0 %584, %v582
          %v586 = vpop.permute.xlu0 %585
          %587 = vset.pattern.permute.xlu0 0
          %588 = vperm.xlu0 %587, %v583
          %v589 = vpop.permute.xlu0 %588
          %vm590 = vcmp.eq.s32.totalorder %v586, 1
          %vm591 = vcmp.eq.s32.totalorder %v589, 1
          %v592 = vsel %vm590, %v436, %v477
          %v593 = vsel %vm591, %v440, %v481
          %v594 = vsel %vm572, 1, 0
          %v595 = vsel %vm573, 1, 0
          %596 = vset.pattern.permute.xlu0 0
          %597 = vperm.xlu0 %596, %v594
          %v598 = vpop.permute.xlu0 %597
          %599 = vset.pattern.permute.xlu0 0
          %600 = vperm.xlu0 %599, %v595
          %v601 = vpop.permute.xlu0 %600
          %vm602 = vcmp.eq.s32.totalorder %v598, 1
          %vm603 = vcmp.eq.s32.totalorder %v601, 1
          %v604 = vsel %vm602, %v434, %v592
          %v605 = vsel %vm603, %v438, %v593
          %v606 = vld [vmem:[%s4] sm:$0x1]
          %v607 = vld [vmem:[%s4 + $0x1] sm:$0x1]
          %v608 = vld [vmem:[%s4 + $0x2] sm:$0x1]
          %v610 = vlaneseq
          %v611 = vshrl.u32 %v610, 7
          %v612 = vsub.s32 0, %v611
          %v613 = vrot.slane %v607, %v612
          %v616 = vlaneseq
          %v617 = vshrl.u32 %v616, 7
          %v618 = vsub.s32 0, %v617
          %v619 = vrot.slane %v608, %v618
          %v621 = vsel %vm590, %v613, %v619
          %v622 = vsel %vm591, %v613, %v619
          %v624 = vlaneseq
          %v625 = vshrl.u32 %v624, 7
          %v626 = vsub.s32 0, %v625
          %v627 = vrot.slane %v606, %v626
          %v629 = vsel %vm602, %v627, %v621
          %v630 = vsel %vm603, %v627, %v622
          %v631 = vadd.f32 %v604, %v629
          %v632 = vadd.f32 %v605, %v630
          %v633 = vsel %vm580, 1, 0
          %v634 = vsel %vm581, 1, 0
          %635 = vset.pattern.permute.xlu0 0
          %636 = vperm.xlu0 %635, %v633
          %v637 = vpop.permute.xlu0 %636
          %638 = vset.pattern.permute.xlu0 0
          %639 = vperm.xlu0 %638, %v634
          %v640 = vpop.permute.xlu0 %639
          %vm641 = vcmp.eq.s32.totalorder %v637, 1
          %vm642 = vcmp.eq.s32.totalorder %v640, 1
          %v643 = vsel %vm641, %v631, 0.0
          %v644 = vsel %vm642, %v632, 0.0
          %v645 = vpack.c.bf16 %v644, %v643
          %v647 = vunpack.c.l.b16 %v645
          %v648 = vunpack.c.h.b16 %v645
          %v649 = vpack.c.b16 %v647, %v647
          %v650 = vpack.c.b16 %v648, %v648
          %653 = vst [vmem:[%s282] sm:$0xf] %v649
          %654 = vst [vmem:[%s282 + $0x4] sm:$0xf] %v650
        $region56: #{_device_forward.1} parent=51 // pred_fallthru
          _
        %p655 = pneg %p290
        // Predicated region
        $region57: #{_device_forward.1} parent=51 // pred_check
          _
        $region58: #{_device_forward.1} parent=51 // pred_check_branch
          %657 = sbr.rel (%p290) target = $region60
        $region59: #{_device_forward.1} parent=51 // pred_region
          %658 = vst [vmem:[%s282] sm:$0xf] 0
          %659 = vst [vmem:[%s282 + $0x4] sm:$0xf] 0
        $region60: #{_device_forward.1} parent=51 // pred_fallthru
          _
        // Predicated region
        $region61: #{_device_forward.1} parent=51 // pred_check
          %p660 = pneg %p291
        $region62: #{_device_forward.1} parent=51 // pred_check_branch
          %662 = sbr.rel (%p660) target = $region64
        $region63: #{_device_forward.1} parent=51 // pred_region
          %vm663 = vcmp.eq.s32.totalorder %v305, 3
          %vm664 = vcmp.eq.s32.totalorder %v306, 3
          %vm665 = vcmp.eq.s32.totalorder %v305, 4
          %vm666 = vcmp.eq.s32.totalorder %v306, 4
          %vm667 = vcmp.eq.s32.totalorder %v305, 5
          %vm668 = vcmp.eq.s32.totalorder %v306, 5
          %v669 = vsel %vm667, 1, 0
          %v670 = vsel %vm668, 1, 0
          %671 = vset.pattern.permute.xlu0 0
          %672 = vperm.xlu0 %671, %v669
          %v673 = vpop.permute.xlu0 %672
          %674 = vset.pattern.permute.xlu0 0
          %675 = vperm.xlu0 %674, %v670
          %v676 = vpop.permute.xlu0 %675
          %vm677 = vcmp.eq.s32.totalorder %v673, 1
          %vm678 = vcmp.eq.s32.totalorder %v676, 1
          %v679 = vsel %vm677, %v522, %v563
          %v680 = vsel %vm678, %v526, %v566
          %v681 = vsel %vm665, 1, 0
          %v682 = vsel %vm666, 1, 0
          %683 = vset.pattern.permute.xlu0 0
          %684 = vperm.xlu0 %683, %v681
          %v685 = vpop.permute.xlu0 %684
          %686 = vset.pattern.permute.xlu0 0
          %687 = vperm.xlu0 %686, %v682
          %v688 = vpop.permute.xlu0 %687
          %vm689 = vcmp.eq.s32.totalorder %v685, 1
          %vm690 = vcmp.eq.s32.totalorder %v688, 1
          %v691 = vsel %vm689, %v520, %v679
          %v692 = vsel %vm690, %v524, %v680
          %v693 = vsel %vm663, 1, 0
          %v694 = vsel %vm664, 1, 0
          %695 = vset.pattern.permute.xlu0 0
          %696 = vperm.xlu0 %695, %v693
          %v697 = vpop.permute.xlu0 %696
          %698 = vset.pattern.permute.xlu0 0
          %699 = vperm.xlu0 %698, %v694
          %v700 = vpop.permute.xlu0 %699
          %vm701 = vcmp.eq.s32.totalorder %v697, 1
          %vm702 = vcmp.eq.s32.totalorder %v700, 1
          %v703 = vsel %vm701, %v479, %v691
          %v704 = vsel %vm702, %v483, %v692
          %v705 = vld [vmem:[%s4 + $0x3] sm:$0x1]
          %v707 = vlaneseq
          %v708 = vshrl.u32 %v707, 7
          %v709 = vsub.s32 0, %v708
          %v710 = vrot.slane %v705, %v709
          %v712 = vadd.f32 %v703, %v710
          %v713 = vadd.f32 %v704, %v710
          %v714 = vpack.c.bf16 %v713, %v712
          %v715 = vld [vmem:[%s5] sm:$0xf]
          %v716 = vld [vmem:[%s5 + $0x4] sm:$0xf]
          %v717 = vld [vmem:[%s5 + $0x8] sm:$0xf]
          %v718 = vld [vmem:[%s5 + $0xc] sm:$0xf]
          %v719 = vld [vmem:[%s5 + $0x10] sm:$0xf]
          %v720 = vld [vmem:[%s5 + $0x14] sm:$0xf]
          %v721 = vld [vmem:[%s5 + $0x18] sm:$0xf]
          %v722 = vld [vmem:[%s5 + $0x1c] sm:$0xf]
          %v723 = vld [vmem:[%s5 + $0x20] sm:$0xf]
          %v724 = vld [vmem:[%s5 + $0x24] sm:$0xf]
          %v725 = vld [vmem:[%s5 + $0x28] sm:$0xf]
          %v726 = vld [vmem:[%s5 + $0x2c] sm:$0xf]
          %v727 = vld [vmem:[%s5 + $0x30] sm:$0xf]
          %v728 = vld [vmem:[%s5 + $0x34] sm:$0xf]
          %v729 = vld [vmem:[%s5 + $0x38] sm:$0xf]
          %v730 = vld [vmem:[%s5 + $0x3c] sm:$0xf]
          %v731 = vld [vmem:[%s6] sm:$0x1]
          %v733 = vlaneseq
          %v734 = vshrl.u32 %v733, 7
          %v735 = vsub.s32 0, %v734
          %v736 = vrot.slane %v731, %v735
          %v754 = vunpack.c.l.b16 %v715
          %v755 = vunpack.c.l.b16 %v716
          %v756 = vunpack.c.l.b16 %v717
          %v757 = vunpack.c.l.b16 %v718
          %v758 = vunpack.c.l.b16 %v719
          %v759 = vunpack.c.l.b16 %v720
          %v760 = vunpack.c.l.b16 %v721
          %v761 = vunpack.c.l.b16 %v722
          %v762 = vunpack.c.l.b16 %v723
          %v763 = vunpack.c.l.b16 %v724
          %v764 = vunpack.c.l.b16 %v725
          %v765 = vunpack.c.l.b16 %v726
          %v766 = vunpack.c.l.b16 %v727
          %v767 = vunpack.c.l.b16 %v728
          %v768 = vunpack.c.l.b16 %v729
          %v769 = vunpack.c.l.b16 %v730
          %v770 = vpack.c.b16 %v755, %v754
          %v771 = vpack.c.b16 %v757, %v756
          %v772 = vpack.c.b16 %v759, %v758
          %v773 = vpack.c.b16 %v761, %v760
          %v774 = vpack.c.b16 %v763, %v762
          %v775 = vpack.c.b16 %v765, %v764
          %v776 = vpack.c.b16 %v767, %v766
          %v777 = vpack.c.b16 %v769, %v768
          %786 = vmatprep.subr.bf16.mxu0 0
          %787 = vmatpush1.bf16.msra.mxu0 %v770
          %788 = vmatprep.subr.bf16.mxu0 0
          %789 = vmatpush1.bf16.msra.mxu0 %v771
          %790 = vmatprep.subr.bf16.mxu0 0
          %791 = vmatpush1.bf16.msra.mxu0 %v772
          %792 = vmatprep.subr.bf16.mxu0 0
          %793 = vmatpush1.bf16.msra.mxu0 %v773
          %794 = vmatprep.subr.bf16.mxu0 0
          %795 = vmatpush1.bf16.msra.mxu0 %v774
          %796 = vmatprep.subr.bf16.mxu0 0
          %797 = vmatpush1.bf16.msra.mxu0 %v775
          %798 = vmatprep.subr.bf16.mxu0 0
          %799 = vmatpush1.bf16.msra.mxu0 %v776
          %800 = vmatprep.subr.bf16.mxu0 0
          %801 = vmatpush1.bf16.msra.mxu0 %v777
          %802 = vmatprep.subr.bf16.mxu0 0
          %803 = vmatpush1.bf16.msra.mxu0 0
          %804 = vmatprep.subr.bf16.mxu0 0
          %805 = vmatpush1.bf16.msra.mxu0 0
          %806 = vmatprep.subr.bf16.mxu0 0
          %807 = vmatpush1.bf16.msra.mxu0 0
          %808 = vmatprep.subr.bf16.mxu0 0
          %809 = vmatpush1.bf16.msra.mxu0 0
          %810 = vmatprep.subr.bf16.mxu0 0
          %811 = vmatpush1.bf16.msra.mxu0 0
          %812 = vmatprep.subr.bf16.mxu0 0
          %813 = vmatpush1.bf16.msra.mxu0 0
          %814 = vmatprep.subr.bf16.mxu0 0
          %815 = vmatpush1.bf16.msra.mxu0 0
          %816 = vmatprep.subr.bf16.mxu0 0
          %817 = vmatpush1.bf16.msra.mxu0 0
          %818 = vmatprep.mubr.bf16.mxu0 0
          %819 = vmatmul.mubr.bf16.gmra.mrb[0].mxu0 %v714
          %v820 = vpop.f32.mrb[0].mxu0
          %v821 = vadd.f32 %v736, %v820
          %v822 = vpop.f32.mrb[0].mxu0
          %v823 = vpop.f32.mrb[0].mxu0
          %v824 = vadd.f32 %v736, %v823
          %v825 = vpop.f32.mrb[0].mxu0
          %826 = vdwg.mxu0
          %vm827 = vcmp.ge.s32.totalorder %v305, 3
          %vm828 = vcmp.ge.s32.totalorder %v306, 3
          %v829 = vpack.c.bf16 %v824, %v821
          %v830 = vld [vmem:[%s282] sm:$0xf]
          %v831 = vld [vmem:[%s282 + $0x4] sm:$0xf]
          %v832 = vsel %vm827, 1, 0
          %v833 = vsel %vm828, 1, 0
          %834 = vset.pattern.permute.xlu0 0
          %835 = vperm.xlu0 %834, %v832
          %v836 = vpop.permute.xlu0 %835
          %837 = vset.pattern.permute.xlu0 0
          %838 = vperm.xlu0 %837, %v833
          %v839 = vpop.permute.xlu0 %838
          %vm840 = vcmp.eq.s32.totalorder %v836, 1
          %vm841 = vcmp.eq.s32.totalorder %v839, 1
          %vm842 = vmpackc.low %vm840, %vm840
          %vm843 = vmpackc.low %vm841, %vm841
          %v844 = vsel %vm842, 65537, 0
          %v845 = vsel %vm843, 65537, 0
          %v846 = vunpack.c.l.b16 %v844
          %v847 = vunpack.c.l.b16 %v845
          %v848 = vpack.c.b16 %v847, %v846
          %vm849 = vcmp.ne.s16.totalorder %v848, 0
          %v852 = vunpack.c.l.b16 %v830
          %v853 = vunpack.c.l.b16 %v831
          %v854 = vpack.c.b16 %v853, %v852
          %v856 = vsel %vm849, %v829, %v854
          %v858 = vunpack.c.l.b16 %v856
          %v859 = vunpack.c.h.b16 %v856
          %v860 = vpack.c.b16 %v858, %v858
          %v861 = vpack.c.b16 %v859, %v859
          %864 = vst [vmem:[%s282] sm:$0xf] %v860
          %865 = vst [vmem:[%s282 + $0x4] sm:$0xf] %v861
        $region64: #{_device_forward.1} parent=51 // pred_fallthru
          _
      $region52: #{_device_forward.1} parent=43 // pred_fallthru
        _
      %s866 = smul.u32 2, %s24
      %p867 = scmp.lt.s32.totalorder %s866, 3
      %s868 = scalar_select %p867, %s866, 3
      %s869 = smul.addr %s868, 4
      %s870 = scalar_lea.vmem %s7, %s869
      // Predicated region
      $region65: #{_device_forward.1} parent=43 // pred_check
        %p871 = pneg %p178
      $region66: #{_device_forward.1} parent=43 // pred_check_branch
        %873 = sbr.rel (%p871) target = $region68
      $region67: #{_device_forward.1} parent=43 // pred_region
        %s874 = smul.u32 2, %s24
      $region68: #{_device_forward.1} parent=43 // pred_fallthru
        _
    $region44: #{_device_forward.1} parent=5 // pred_fallthru
      _
    %p875 = scmp.le.s32.totalorder 2, %s19
    // Predicated region
    $region69: #{_device_forward.1} parent=5 // pred_check
      %p876 = pneg %p875
    $region70: #{_device_forward.1} parent=5 // pred_check_branch
      %878 = sbr.rel (%p876) target = $region72
    $region71: #{_device_forward.1} parent=5 // pred_region
      %s879 = ssub.s32 %s19, 2
      // Predicated region
      $region73: #{_device_forward.1} parent=71 // pred_check
        %p880 = pneg %p184
      $region74: #{_device_forward.1} parent=71 // pred_check_branch
        %882 = sbr.rel (%p880) target = $region76
      $region75: #{_device_forward.1} parent=71 // pred_region
        %s883 = smul.u32 2, %s25
        %p884 = scmp.lt.s32.totalorder %s883, 3
        %s885 = scalar_select %p884, %s883, 3
        %s886 = smul.addr %s885, 4
        %s887 = scalar_lea.vmem %s7, %s886
      $region76: #{_device_forward.1} parent=71 // pred_fallthru
        _
    $region72: #{_device_forward.1} parent=5 // pred_fallthru
      _
  $region6: #{_device_forward.1} parent=0 // loop_footer
    %s23 = sadd.s32 1, %s19
  $region7: #{_device_forward.1} parent=0 // loop_footer_branch
    %18 = sbr.rel target = $region3
  $region8: #{_device_forward.1} parent=0 // loop_exit
    _

</llo_original>
